<compile_context>
chip_gen: v6e
topology: v6e:2x2x1
jax: 0.10.0
libtpu: 0.0.40
codegen_flags: <defaults>
</compile_context>

<pallas_src>
import functools

import jax
import jax.numpy as jnp
from jax.experimental import pallas as pl
from jax.experimental.pallas import tpu as pltpu

# torch.finfo(torch.float32).eps (Python float literal, used in-kernel)
_TORCH_F32_EPS = 1.1920928955078125e-07
# F.normalize default eps
_NORMALIZE_EPS = 1e-12


def _sop_loss_kernel(u_ref, v_ref, yhat_ref, y_ref, out_ref, *, batch,
                     num_classes, mask_tail):
    """One batch tile. Layout: (classes, tile_batch); classes on sublanes."""
    pid = pl.program_id(0)

    @pl.when(pid == 0)
    def _():
        out_ref[...] = jnp.zeros_like(out_ref)

    u = u_ref[...]          # (1, tb)   gathered u[idx] (transposed)
    v = v_ref[...]          # (C, tb)   gathered v[idx] (transposed)
    yhat = yhat_ref[...]    # (C, tb)   logits (transposed)
    y = y_ref[...]          # (C, tb)   one-hot / soft targets (transposed)

    tb = yhat.shape[1]

    # usq = clamp(u[idx]^2 * y, 0, 1);  vsq = clamp(v[idx]^2 * (1-y), 0, 1)
    usq = jnp.clip(u * u * y, 0.0, 1.0)
    vsq = jnp.clip(v * v * (1.0 - y), 0.0, 1.0)

    # softmax over classes (axis 0, sublane reduction)
    m = jnp.max(yhat, axis=0, keepdims=True)                      # (1, tb)
    e = jnp.exp(yhat - m)
    sm = e * pl.reciprocal(jnp.sum(e, axis=0, keepdims=True), approx=False)

    # prob = relu(softmax + usq - vsq)
    prob = jnp.maximum(sm + usq - vsq, 0.0)

    # F.normalize(prob, p=1, dim=classes): prob >= 0 so |prob| == prob.
    denom = jnp.maximum(jnp.sum(prob, axis=0, keepdims=True), _NORMALIZE_EPS)
    prob = prob * pl.reciprocal(denom, approx=False)
    prob = jnp.maximum(prob, _TORCH_F32_EPS)

    # cross-entropy with soft targets: -sum_c y * log_softmax(log(prob)).
    # log_softmax(log p) = log p - log(sum p)   (exact; avoids a second
    # exp/max/log-sum-exp pass through the EUP).
    logp = jnp.log(prob)
    lse = jnp.log(jnp.sum(prob, axis=0, keepdims=True))           # (1, tb)
    log_sm = logp - lse
    ce_col = -jnp.sum(y * log_sm, axis=0, keepdims=True)          # (1, tb)

    # hard_yhat = one_hot(argmax over classes), first-max tie-break.
    row = jax.lax.broadcasted_iota(jnp.int32, yhat.shape, 0)      # class ids
    is_max = yhat == m
    first_idx = jnp.min(jnp.where(is_max, row, num_classes), axis=0,
                        keepdims=True)                            # (1, tb)
    hard_yhat = (row == first_idx).astype(jnp.float32)

    diff = hard_yhat + usq - vsq - y                              # (C, tb)
    mse_col = jnp.sum(diff * diff, axis=0, keepdims=True)         # (1, tb)

    if mask_tail:
        # mask out padded batch columns (only the last tile actually needs it,
        # but the branch-free multiply is cheaper than a pl.when split).
        col = jax.lax.broadcasted_iota(jnp.int32, (1, tb), 1)
        valid = ((pid * tb + col) < batch).astype(jnp.float32)    # (1, tb)
        ce_part = jnp.sum(ce_col * valid)
        mse_part = jnp.sum(mse_col * valid)
    else:
        ce_part = jnp.sum(ce_col)
        mse_part = jnp.sum(mse_col)

    out_ref[...] = out_ref[...] + (ce_part * (1.0 / batch)
                                   + mse_part * (1.0 / (batch * num_classes)))


def sop_loss_pallas(u, v, idx, yhat, y, num_classes, *, batch_tile=512):
    """Pallas implementation of SOPLoss.forward(idx, yhat, y)."""
    yhat = yhat.astype(jnp.float32)
    if y.ndim != yhat.ndim or y.shape != yhat.shape:
        y_soft = jax.nn.one_hot(y, num_classes, dtype=jnp.float32)
    else:
        y_soft = y.astype(jnp.float32)

    # glue: gather the per-example parameter rows
    u_sel = u[idx].astype(jnp.float32)   # (B, 1)
    v_sel = v[idx].astype(jnp.float32)   # (B, C)

    B, C = yhat.shape

    # lane-dense layout: classes -> sublanes (axis 0), batch -> lanes (axis 1)
    u_t = u_sel.T        # (1, B)
    v_t = v_sel.T        # (C, B)
    yhat_t = yhat.T      # (C, B)
    y_t = y_soft.T       # (C, B)

    if B > batch_tile:
        # Tiling path: tile width must be a multiple of 128 (lane constraint).
        tb = max(128, (int(batch_tile) // 128) * 128)
        # Keep the double-buffered working set comfortably inside VMEM:
        # per column we hold ~ (3*C + 2) f32 across the four inputs.
        bytes_per_col = 4 * (3 * C + 2)
        vmem_budget = 16 * 1024 * 1024
        tb_cap = max(128, (vmem_budget // (2 * bytes_per_col) // 128) * 128)
        tb = min(tb, tb_cap)
        b_pad = pl.cdiv(B, tb) * tb
    else:
        # Single-tile path: full-extent block satisfies the layout rule.
        tb = B
        b_pad = B

    if b_pad > B:
        pad = ((0, 0), (0, b_pad - B))
        u_t = jnp.pad(u_t, pad)
        v_t = jnp.pad(v_t, pad)
        yhat_t = jnp.pad(yhat_t, pad)
        y_t = jnp.pad(y_t, pad)

    grid = (b_pad // tb,)
    mask_tail = b_pad != B

    kernel = functools.partial(_sop_loss_kernel, batch=B, num_classes=C,
                               mask_tail=mask_tail)

    out = pl.pallas_call(
        kernel,
        out_shape=jax.ShapeDtypeStruct((1, 1), jnp.float32),
        grid_spec=pltpu.PrefetchScalarGridSpec(
            num_scalar_prefetch=0,
            grid=grid,
            in_specs=[
                pl.BlockSpec((1, tb), lambda i: (0, i)),
                pl.BlockSpec((C, tb), lambda i: (0, i)),
                pl.BlockSpec((C, tb), lambda i: (0, i)),
                pl.BlockSpec((C, tb), lambda i: (0, i)),
            ],
            out_specs=pl.BlockSpec((1, 1), lambda i: (0, 0)),
        ),
        compiler_params=pltpu.CompilerParams(
            dimension_semantics=("arbitrary",),
            vmem_limit_bytes=64 * 1024 * 1024,
        ),
    )(u_t, v_t, yhat_t, y_t)
    return out[0, 0]


def sop_loss_reference(u, v, idx, yhat, y, num_classes):
    """Pure-JAX reference mirroring the PyTorch forward (for self-check)."""
    if y.ndim != yhat.ndim or y.shape != yhat.shape:
        y = jax.nn.one_hot(y, num_classes, dtype=jnp.float32)
    usq = jnp.clip(u[idx] ** 2 * y, 0.0, 1.0)
    vsq = jnp.clip(v[idx] ** 2 * (1.0 - y), 0.0, 1.0)
    prob = jnp.maximum(jax.nn.softmax(yhat, axis=-1) + usq - vsq, 0.0)
    prob = prob / jnp.maximum(jnp.sum(jnp.abs(prob), -1, keepdims=True), 1e-12)
    prob = jnp.maximum(prob, _TORCH_F32_EPS)
    log_sm = jax.nn.log_softmax(jnp.log(prob), axis=-1)
    ce = jnp.mean(-jnp.sum(y * log_sm, axis=-1))
    hard = jax.nn.one_hot(jnp.argmax(yhat, -1), num_classes, dtype=jnp.float32)
    mse = jnp.mean((hard + usq - vsq - y) ** 2)
    return ce + mse


if __name__ == "__main__":
    train_sz = 32
    num_classes = 8
    batch = 8

    key = jax.random.PRNGKey(0)
    k_u, k_v, k_idx, k_yhat, k_y = jax.random.split(key, 5)

    # nn.init.normal_(..., mean=0.0, std=1e-8)
    u = 1e-8 * jax.random.normal(k_u, (train_sz, 1), dtype=jnp.float32)
    v = 1e-8 * jax.random.normal(k_v, (train_sz, num_classes), dtype=jnp.float32)

    idx = jax.random.randint(k_idx, (batch,), 0, train_sz)
    yhat = jax.random.normal(k_yhat, (batch, num_classes), dtype=jnp.float32)
    y = jax.random.randint(k_y, (batch,), 0, num_classes)

    loss = sop_loss_pallas(u, v, idx, yhat, y, num_classes)
    jax.block_until_ready(loss)
    ref = sop_loss_reference(u, v, idx, yhat, y, num_classes)
    assert jnp.allclose(loss, ref, rtol=1e-5, atol=1e-5), (loss, ref)

    # also exercise the multi-tile (grid > 1) path with batch padding/masking
    batch2 = 300
    k_idx2, k_yhat2, k_y2 = jax.random.split(k_y, 3)
    idx2 = jax.random.randint(k_idx2, (batch2,), 0, train_sz)
    yhat2 = jax.random.normal(k_yhat2, (batch2, num_classes), dtype=jnp.float32)
    y2 = jax.random.randint(k_y2, (batch2,), 0, num_classes)

    loss2 = sop_loss_pallas(u, v, idx2, yhat2, y2, num_classes, batch_tile=128)
    jax.block_until_ready(loss2)
    ref2 = sop_loss_reference(u, v, idx2, yhat2, y2, num_classes)
    assert jnp.allclose(loss2, ref2, rtol=1e-5, atol=1e-5), (loss2, ref2)

    print("KERNEL_OK")
</pallas_src>

<mosaic_0001>
module attributes {stable_mosaic.version = 11 : i64} {
  func.func @_sop_loss_kernel(%arg0: i32, %arg1: memref<1x8xf32, #tpu.memory_space<vmem>>, %arg2: memref<8x8xf32, #tpu.memory_space<vmem>>, %arg3: memref<8x8xf32, #tpu.memory_space<vmem>>, %arg4: memref<8x8xf32, #tpu.memory_space<vmem>>, %arg5: memref<1x1xf32, #tpu.memory_space<vmem>>) attributes {dimension_semantics = [#tpu.dimension_semantics<arbitrary>], iteration_bounds = array<i64: 1>, scalar_prefetch = 0 : i64, scratch_operands = 0 : i64, tpu.core_type = #tpu.core_type<tc>, window_params = [{transform_indices = @transform_0, window_bounds = array<i64: 1, 8>}, {transform_indices = @transform_1, window_bounds = array<i64: 8, 8>}, {transform_indices = @transform_2, window_bounds = array<i64: 8, 8>}, {transform_indices = @transform_3, window_bounds = array<i64: 8, 8>}, {pipeline_mode = #tpu.pipeline_mode<synchronous>, transform_indices = @transform_4, window_bounds = array<i64: 1, 1>}]} {
    %c0_i32 = arith.constant 0 : i32
    %0 = arith.cmpi eq, %arg0, %c0_i32 : i32
    %1 = arith.extui %0 : i1 to i32
    %c0_i32_0 = arith.constant 0 : i32
    %2 = arith.cmpi ne, %1, %c0_i32_0 : i32
    scf.if %2 {
      %cst_31 = arith.constant 0.000000e+00 : f32
      %88 = vector.broadcast %cst_31 : f32 to vector<1x1xf32>
      %c0_32 = arith.constant 0 : index
      %c0_33 = arith.constant 0 : index
      %89 = vector.load %arg5[%c0_32, %c0_33] : memref<1x1xf32, #tpu.memory_space<vmem>>, vector<1x1xf32>
      tpu.vector_store %arg5[%c0_32, %c0_33], %88 {strides = array<i32>} : memref<1x1xf32, #tpu.memory_space<vmem>>, vector<1x1xf32>,
    } else {
    }
    %c0 = arith.constant 0 : index
    %c0_1 = arith.constant 0 : index
    %3 = vector.load %arg1[%c0, %c0_1] : memref<1x8xf32, #tpu.memory_space<vmem>>, vector<1x8xf32>
    %c0_2 = arith.constant 0 : index
    %c0_3 = arith.constant 0 : index
    %4 = vector.load %arg2[%c0_2, %c0_3] : memref<8x8xf32, #tpu.memory_space<vmem>>, vector<8x8xf32>
    %c0_4 = arith.constant 0 : index
    %c0_5 = arith.constant 0 : index
    %5 = vector.load %arg3[%c0_4, %c0_5] : memref<8x8xf32, #tpu.memory_space<vmem>>, vector<8x8xf32>
    %c0_6 = arith.constant 0 : index
    %c0_7 = arith.constant 0 : index
    %6 = vector.load %arg4[%c0_6, %c0_7] : memref<8x8xf32, #tpu.memory_space<vmem>>, vector<8x8xf32>
    %7 = arith.mulf %3, %3 : vector<1x8xf32>
    %8 = vector.broadcast %7 : vector<1x8xf32> to vector<8x8xf32>
    %9 = arith.mulf %8, %6 : vector<8x8xf32>
    %cst = arith.constant 0.000000e+00 : f32
    %cst_8 = arith.constant 1.000000e+00 : f32
    %10 = vector.broadcast %cst : f32 to vector<8x8xf32>
    %11 = arith.maximumf %10, %9 : vector<8x8xf32>
    %12 = vector.broadcast %cst_8 : f32 to vector<8x8xf32>
    %13 = arith.minimumf %12, %11 : vector<8x8xf32>
    %14 = arith.mulf %4, %4 : vector<8x8xf32>
    %cst_9 = arith.constant 1.000000e+00 : f32
    %15 = vector.broadcast %cst_9 : f32 to vector<8x8xf32>
    %16 = arith.subf %15, %6 : vector<8x8xf32>
    %17 = arith.mulf %14, %16 : vector<8x8xf32>
    %cst_10 = arith.constant 0.000000e+00 : f32
    %cst_11 = arith.constant 1.000000e+00 : f32
    %18 = vector.broadcast %cst_10 : f32 to vector<8x8xf32>
    %19 = arith.maximumf %18, %17 : vector<8x8xf32>
    %20 = vector.broadcast %cst_11 : f32 to vector<8x8xf32>
    %21 = arith.minimumf %20, %19 : vector<8x8xf32>
    %cst_12 = arith.constant dense<0xFF800000> : vector<8xf32>
    %22 = vector.multi_reduction <maximumf>, %5, %cst_12 [0] : vector<8x8xf32> to vector<8xf32>
    %23 = vector.shape_cast %22 : vector<8xf32> to vector<1x8xf32>
    %24 = vector.broadcast %23 : vector<1x8xf32> to vector<8x8xf32>
    %25 = arith.subf %5, %24 : vector<8x8xf32>
    %26 = math.exp %25 : vector<8x8xf32>
    %cst_13 = arith.constant dense<0.000000e+00> : vector<8xf32>
    %27 = vector.multi_reduction <add>, %26, %cst_13 [0] : vector<8x8xf32> to vector<8xf32>
    %28 = vector.shape_cast %27 : vector<8xf32> to vector<1x8xf32>
    %29 = tpu.reciprocal %28 : vector<1x8xf32> -> vector<1x8xf32>
    %30 = vector.broadcast %29 : vector<1x8xf32> to vector<8x8xf32>
    %31 = arith.mulf %26, %30 : vector<8x8xf32>
    %32 = arith.addf %31, %13 : vector<8x8xf32>
    %33 = arith.subf %32, %21 : vector<8x8xf32>
    %cst_14 = arith.constant 0.000000e+00 : f32
    %34 = vector.broadcast %cst_14 : f32 to vector<8x8xf32>
    %35 = arith.maximumf %33, %34 : vector<8x8xf32>
    %cst_15 = arith.constant dense<0.000000e+00> : vector<8xf32>
    %36 = vector.multi_reduction <add>, %35, %cst_15 [0] : vector<8x8xf32> to vector<8xf32>
    %37 = vector.shape_cast %36 : vector<8xf32> to vector<1x8xf32>
    %cst_16 = arith.constant 9.99999996E-13 : f32
    %38 = vector.broadcast %cst_16 : f32 to vector<1x8xf32>
    %39 = arith.maximumf %37, %38 : vector<1x8xf32>
    %40 = tpu.reciprocal %39 : vector<1x8xf32> -> vector<1x8xf32>
    %41 = vector.broadcast %40 : vector<1x8xf32> to vector<8x8xf32>
    %42 = arith.mulf %35, %41 : vector<8x8xf32>
    %cst_17 = arith.constant 1.1920929E-7 : f32
    %43 = vector.broadcast %cst_17 : f32 to vector<8x8xf32>
    %44 = arith.maximumf %42, %43 : vector<8x8xf32>
    %45 = math.log %44 : vector<8x8xf32>
    %cst_18 = arith.constant dense<0.000000e+00> : vector<8xf32>
    %46 = vector.multi_reduction <add>, %44, %cst_18 [0] : vector<8x8xf32> to vector<8xf32>
    %47 = vector.shape_cast %46 : vector<8xf32> to vector<1x8xf32>
    %48 = math.log %47 : vector<1x8xf32>
    %49 = vector.broadcast %48 : vector<1x8xf32> to vector<8x8xf32>
    %50 = arith.subf %45, %49 : vector<8x8xf32>
    %51 = arith.mulf %6, %50 : vector<8x8xf32>
    %cst_19 = arith.constant dense<0.000000e+00> : vector<8xf32>
    %52 = vector.multi_reduction <add>, %51, %cst_19 [0] : vector<8x8xf32> to vector<8xf32>
    %53 = vector.shape_cast %52 : vector<8xf32> to vector<1x8xf32>
    %cst_20 = arith.constant 0.000000e+00 : f32
    %54 = vector.broadcast %cst_20 : f32 to vector<1x8xf32>
    %55 = arith.subf %54, %53 : vector<1x8xf32>
    %56 = tpu.iota {dimensions = array<i32: 0>} : vector<8x8xi32>
    %57 = vector.broadcast %23 : vector<1x8xf32> to vector<8x8xf32>
    %58 = arith.cmpf oeq, %5, %57 : vector<8x8xf32>
    %c8_i32 = arith.constant 8 : i32
    %59 = vector.broadcast %c8_i32 : i32 to vector<8x8xi32>
    %60 = arith.select %58, %56, %59 : vector<8x8xi1>, vector<8x8xi32>
    %cst_21 = arith.constant dense<2147483647> : vector<8xi32>
    %61 = vector.multi_reduction <minsi>, %60, %cst_21 [0] : vector<8x8xi32> to vector<8xi32>
    %62 = vector.shape_cast %61 : vector<8xi32> to vector<1x8xi32>
    %63 = vector.broadcast %62 : vector<1x8xi32> to vector<8x8xi32>
    %64 = arith.cmpi eq, %56, %63 : vector<8x8xi32>
    %65 = arith.extui %64 : vector<8x8xi1> to vector<8x8xi32>
    %66 = arith.sitofp %65 : vector<8x8xi32> to vector<8x8xf32>
    %67 = arith.addf %66, %13 : vector<8x8xf32>
    %68 = arith.subf %67, %21 : vector<8x8xf32>
    %69 = arith.subf %68, %6 : vector<8x8xf32>
    %70 = arith.mulf %69, %69 : vector<8x8xf32>
    %cst_22 = arith.constant dense<0.000000e+00> : vector<8xf32>
    %71 = vector.multi_reduction <add>, %70, %cst_22 [0] : vector<8x8xf32> to vector<8xf32>
    %72 = vector.shape_cast %71 : vector<8xf32> to vector<1x8xf32>
    %73 = vector.shape_cast %55 : vector<1x8xf32> to vector<1x1x8xf32>
    %cst_23 = arith.constant dense<0.000000e+00> : vector<1xf32>
    %74 = vector.multi_reduction <add>, %73, %cst_23 [1, 2] : vector<1x1x8xf32> to vector<1xf32>
    %75 = vector.shape_cast %74 : vector<1xf32> to vector<1x1x1xf32>
    %76 = vector.extract %75[0, 0, 0] : f32 from vector<1x1x1xf32>
    %77 = vector.shape_cast %72 : vector<1x8xf32> to vector<1x1x8xf32>
    %cst_24 = arith.constant dense<0.000000e+00> : vector<1xf32>
    %78 = vector.multi_reduction <add>, %77, %cst_24 [1, 2] : vector<1x1x8xf32> to vector<1xf32>
    %79 = vector.shape_cast %78 : vector<1xf32> to vector<1x1x1xf32>
    %80 = vector.extract %79[0, 0, 0] : f32 from vector<1x1x1xf32>
    %c0_25 = arith.constant 0 : index
    %c0_26 = arith.constant 0 : index
    %81 = vector.load %arg5[%c0_25, %c0_26] : memref<1x1xf32, #tpu.memory_space<vmem>>, vector<1x1xf32>
    %cst_27 = arith.constant 1.250000e-01 : f32
    %82 = arith.mulf %76, %cst_27 : f32
    %cst_28 = arith.constant 1.562500e-02 : f32
    %83 = arith.mulf %80, %cst_28 : f32
    %84 = arith.addf %82, %83 : f32
    %85 = vector.broadcast %84 : f32 to vector<1x1xf32>
    %86 = arith.addf %81, %85 : vector<1x1xf32>
    %c0_29 = arith.constant 0 : index
    %c0_30 = arith.constant 0 : index
    %87 = vector.load %arg5[%c0_29, %c0_30] : memref<1x1xf32, #tpu.memory_space<vmem>>, vector<1x1xf32>
    tpu.vector_store %arg5[%c0_29, %c0_30], %86 {strides = array<i32>} : memref<1x1xf32, #tpu.memory_space<vmem>>, vector<1x1xf32>,
    return
  }
  func.func @transform_0(%arg0: i32) -> (i32, i32) {
    %c0_i32 = arith.constant 0 : i32
    %c0_i32_0 = arith.constant 0 : i32
    return %c0_i32, %arg0 : i32, i32
  }
  func.func @transform_1(%arg0: i32) -> (i32, i32) {
    %c0_i32 = arith.constant 0 : i32
    %c0_i32_0 = arith.constant 0 : i32
    return %c0_i32, %arg0 : i32, i32
  }
  func.func @transform_2(%arg0: i32) -> (i32, i32) {
    %c0_i32 = arith.constant 0 : i32
    %c0_i32_0 = arith.constant 0 : i32
    return %c0_i32, %arg0 : i32, i32
  }
  func.func @transform_3(%arg0: i32) -> (i32, i32) {
    %c0_i32 = arith.constant 0 : i32
    %c0_i32_0 = arith.constant 0 : i32
    return %c0_i32, %arg0 : i32, i32
  }
  func.func @transform_4(%arg0: i32) -> (i32, i32) {
    %c0_i32 = arith.constant 0 : i32
    %c0_i32_0 = arith.constant 0 : i32
    %c0_i32_1 = arith.constant 0 : i32
    return %c0_i32, %c0_i32_0 : i32, i32
  }
}

</mosaic_0001>

<llo_original>
// kernel: tpu_custom_call.1
$region0: #{tpu_custom_call.1}
  #allocation0 [shape = 'u32[]', space=smem, size = 0x4, offset = 0x4, fixed_abs, tag = 'smem constant byte address 0x4 - core index']
  #allocation1 [shape = 'u32[144,128]{1,0:T(1,128)}', space=vmem, size = 0x12000, scoped, tag = 'internal scratch']
  %s0 = inlined_call_operand.hbm [shape: f32[1,8], index: 0, kind: input, shape index: {}]
  %s1 = inlined_call_operand.hbm [shape: f32[8,8], index: 1, kind: input, shape index: {}]
  %s2 = inlined_call_operand.hbm [shape: f32[8,8], index: 2, kind: input, shape index: {}]
  %s3 = inlined_call_operand.hbm [shape: f32[8,8], index: 3, kind: input, shape index: {}]
  %s4 = inlined_call_operand.hbm [shape: f32[1,1], index: 4, kind: output, shape index: {}]
  %s5 = sld [smem:[#allocation0]]
  $region46: #{tpu_custom_call.1} parent=0
    _
  %s7 = ssub.s32 1, %s5
  %s8 = scalar_select 0, %s7, %s5
  $region1: #{tpu_custom_call.1} parent=0
    #allocation2 [shape = 'u8[512]{0}', space=vmem, size = 0x400, scoped, tag = 'input window, operand 0, single buffered']
    #allocation3 [shape = 's32[1]{0}', space=sflag, size = 0x4, scoped, tag = 'scoped memory for tpu_custom_call.1']
    #allocation4 [shape = 's32[1]{0}', space=sflag, size = 0x4, scoped, tag = 'scoped memory for tpu_custom_call.1']
    #allocation5 [shape = 'u8[4096]{0}', space=vmem, size = 0x1000, scoped, tag = 'input window, operand 1, single buffered']
    #allocation6 [shape = 's32[1]{0}', space=sflag, size = 0x4, scoped, tag = 'scoped memory for tpu_custom_call.1']
    #allocation7 [shape = 'u8[4096]{0}', space=vmem, size = 0x1000, scoped, tag = 'input window, operand 2, single buffered']
    #allocation8 [shape = 'u8[4096]{0}', space=vmem, size = 0x1000, scoped, tag = 'input window, operand 3, single buffered']
    #allocation9 [shape = 's32[1]{0}', space=sflag, size = 0x4, scoped, tag = 'scoped memory for tpu_custom_call.1']
    #allocation10 [shape = 'u8[512]{0}', space=vmem, size = 0x400, scoped, tag = 'output window, operand 0, single buffered']
    %9 = vsyncpa [#allocation3], 0
    %10 = vsyncpa [#allocation6], 0
    %11 = vsyncpa [#allocation9], 0
    %12 = vsyncpa [#allocation4], 0
    // Predicated region
    $region2: #{tpu_custom_call.1} parent=1 // pred_check
      _
    $region3: #{tpu_custom_call.1} parent=1 // pred_check_branch
      %14 = sbr.rel (0) target = $region5
    $region4: #{tpu_custom_call.1} parent=1 // pred_region
      %s16 = ssub.s32 16, 16
      %17 = vsyncadd [#allocation3], %s16
      %s19 = sshll.u32 [#allocation2], 4
      %s20 = int_to_ptr.vmem [resolvable:$true] %s19
      %22 = dma.hbm_to_vmem [thread:$0]  %s0, 16, %s20, [#allocation3]
    $region5: #{tpu_custom_call.1} parent=1 // pred_fallthru
      _
    // Predicated region
    $region6: #{tpu_custom_call.1} parent=1 // pred_check
      _
    $region7: #{tpu_custom_call.1} parent=1 // pred_check_branch
      %24 = sbr.rel (0) target = $region9
    $region8: #{tpu_custom_call.1} parent=1 // pred_region
      %s26 = ssub.s32 128, 128
      %27 = vsyncadd [#allocation6], %s26
      %s29 = sshll.u32 [#allocation5], 4
      %s30 = int_to_ptr.vmem [resolvable:$true] %s29
      %32 = dma.hbm_to_vmem [thread:$0]  %s1, 128, %s30, [#allocation6]
    $region9: #{tpu_custom_call.1} parent=1 // pred_fallthru
      _
    // Predicated region
    $region10: #{tpu_custom_call.1} parent=1 // pred_check
      _
    $region11: #{tpu_custom_call.1} parent=1 // pred_check_branch
      %34 = sbr.rel (0) target = $region13
    $region12: #{tpu_custom_call.1} parent=1 // pred_region
      %s36 = ssub.s32 128, 128
      %37 = vsyncadd [#allocation6], %s36
      %s39 = sshll.u32 [#allocation7], 4
      %s40 = int_to_ptr.vmem [resolvable:$true] %s39
      %42 = dma.hbm_to_vmem [thread:$0]  %s2, 128, %s40, [#allocation6]
    $region13: #{tpu_custom_call.1} parent=1 // pred_fallthru
      _
    // Predicated region
    $region14: #{tpu_custom_call.1} parent=1 // pred_check
      _
    $region15: #{tpu_custom_call.1} parent=1 // pred_check_branch
      %44 = sbr.rel (0) target = $region17
    $region16: #{tpu_custom_call.1} parent=1 // pred_region
      %s46 = ssub.s32 128, 128
      %47 = vsyncadd [#allocation9], %s46
      %s49 = sshll.u32 [#allocation8], 4
      %s50 = int_to_ptr.vmem [resolvable:$true] %s49
      %52 = dma.hbm_to_vmem [thread:$0]  %s3, 128, %s50, [#allocation9]
    $region17: #{tpu_custom_call.1} parent=1 // pred_fallthru
      _
    // Predicated region
    $region18: #{tpu_custom_call.1} parent=1 // pred_check
      _
    $region19: #{tpu_custom_call.1} parent=1 // pred_check_branch
      %54 = sbr.rel (0) target = $region21
    $region20: #{tpu_custom_call.1} parent=1 // pred_region
      %55 = dma.done [#allocation3], 16
    $region21: #{tpu_custom_call.1} parent=1 // pred_fallthru
      _
    // Predicated region
    $region22: #{tpu_custom_call.1} parent=1 // pred_check
      _
    $region23: #{tpu_custom_call.1} parent=1 // pred_check_branch
      %57 = sbr.rel (0) target = $region25
    $region24: #{tpu_custom_call.1} parent=1 // pred_region
      %58 = dma.done [#allocation6], 128
    $region25: #{tpu_custom_call.1} parent=1 // pred_fallthru
      _
    // Predicated region
    $region26: #{tpu_custom_call.1} parent=1 // pred_check
      _
    $region27: #{tpu_custom_call.1} parent=1 // pred_check_branch
      %60 = sbr.rel (0) target = $region29
    $region28: #{tpu_custom_call.1} parent=1 // pred_region
      %61 = dma.done [#allocation6], 128
    $region29: #{tpu_custom_call.1} parent=1 // pred_fallthru
      _
    // Predicated region
    $region30: #{tpu_custom_call.1} parent=1 // pred_check
      _
    $region31: #{tpu_custom_call.1} parent=1 // pred_check_branch
      %63 = sbr.rel (0) target = $region33
    $region32: #{tpu_custom_call.1} parent=1 // pred_region
      %64 = dma.done [#allocation9], 128
    $region33: #{tpu_custom_call.1} parent=1 // pred_fallthru
      _
    %p65 = scmp.eq.s32.totalorder 0, 0
    // Predicated region
    $region34: #{tpu_custom_call.1} parent=1 // pred_check
      %p66 = pneg %p65
    $region35: #{tpu_custom_call.1} parent=1 // pred_check_branch
      %68 = sbr.rel (%p66) target = $region37
    $region36: #{tpu_custom_call.1} parent=1 // pred_region
      %vm69 = vcmask 0
      %70 = vst.msk [vmem:[#allocation10] sm:$0x1] %vm69, 0.0
    $region37: #{tpu_custom_call.1} parent=1 // pred_fallthru
      _
    %v71 = vld [vmem:[#allocation2] sm:$0x1]
    %v72 = vld [vmem:[#allocation5] sm:$0xff]
    %v73 = vld [vmem:[#allocation7] sm:$0xff]
    %v74 = vld [vmem:[#allocation8] sm:$0xff]
    %v75 = vmul.f32 %v71, %v71
    %v77 = vlaneseq
    %v78 = vshrl.u32 %v77, 7
    %v79 = vsub.s32 0, %v78
    %v80 = vrot.slane %v75, %v79
    %v82 = vmul.f32 %v80, %v74
    %v83 = vmax.f32 %v82, 0.0
    %v84 = vmin.f32 %v83, 1.0
    %v85 = vmul.f32 %v72, %v72
    %v86 = vsub.f32 1.0, %v74
    %v87 = vmul.f32 %v85, %v86
    %v88 = vmax.f32 %v87, 0.0
    %v89 = vmin.f32 %v88, 1.0
    %vm90 = vcmask 64512
    %v91 = vsel %vm90, %v73, -inf
    %v92 = vrot.slane %v91, 4
    %v93 = vmax.f32 %v91, %v92
    %v94 = vrot.slane %v93, 2
    %v95 = vmax.f32 %v93, %v94
    %v96 = vrot.slane %v95, 1
    %v97 = vmax.f32 %v95, %v96
    %v98 = vsub.f32 %v73, %v97
    %v99 = vmul.f32 %v98, 1.442695
    %v100 = vpow.pop %v99
    %v101 = vsel %vm90, %v100, 0.0
    %v102 = vrot.slane %v101, 4
    %v103 = vadd.f32 %v101, %v102
    %v104 = vrot.slane %v103, 2
    %v105 = vadd.f32 %v103, %v104
    %v106 = vrot.slane %v105, 1
    %v107 = vadd.f32 %v105, %v106
    %v108 = vrcp.pop %v107
    %v109 = vmul.f32 %v100, %v108
    %v110 = vadd.f32 %v109, %v84
    %v111 = vsub.f32 %v110, %v89
    %v112 = vmax.f32 %v111, 0.0
    %v113 = vsel %vm90, %v112, 0.0
    %v114 = vrot.slane %v113, 4
    %v115 = vadd.f32 %v113, %v114
    %v116 = vrot.slane %v115, 2
    %v117 = vadd.f32 %v115, %v116
    %v118 = vrot.slane %v117, 1
    %v119 = vadd.f32 %v117, %v118
    %v120 = vmax.f32 %v119, 1e-12
    %v121 = vrcp.pop %v120
    %v122 = vmul.f32 %v112, %v121
    %v123 = vmax.f32 %v122, 1.1920929e-07
    %v124 = vlog2.pop %v123
    %v125 = vmul.f32 %v124, 0.6931472
    %v126 = vsel %vm90, %v123, 0.0
    %v127 = vrot.slane %v126, 4
    %v128 = vadd.f32 %v126, %v127
    %v129 = vrot.slane %v128, 2
    %v130 = vadd.f32 %v128, %v129
    %v131 = vrot.slane %v130, 1
    %v132 = vadd.f32 %v130, %v131
    %v133 = vlog2.pop %v132
    %v134 = vmul.f32 %v133, 0.6931472
    %v135 = vsub.f32 %v125, %v134
    %v136 = vmul.f32 %v74, %v135
    %v137 = vsel %vm90, %v136, 0.0
    %v138 = vrot.slane %v137, 4
    %v139 = vadd.f32 %v137, %v138
    %v140 = vrot.slane %v139, 2
    %v141 = vadd.f32 %v139, %v140
    %v142 = vrot.slane %v141, 1
    %v143 = vadd.f32 %v141, %v142
    %v144 = vsub.f32 0.0, %v143
    %v145 = vlaneseq
    %v146 = vshrl.u32 %v145, 7
    %vm147 = vcmp.eq.f32.partialorder %v73, %v97
    %v148 = vsel %vm147, %v146, 8
    %v149 = vsel %vm90, %v148, 2147483647
    %v150 = vrot.slane %v149, 4
    %vm151 = vcmp.lt.s32.totalorder %v149, %v150
    %v152 = vsel %vm151, %v149, %v150
    %v153 = vrot.slane %v152, 2
    %vm154 = vcmp.lt.s32.totalorder %v152, %v153
    %v155 = vsel %vm154, %v152, %v153
    %v156 = vrot.slane %v155, 1
    %vm157 = vcmp.lt.s32.totalorder %v155, %v156
    %v158 = vsel %vm157, %v155, %v156
    %vm159 = vcmp.eq.s32.totalorder %v146, %v158
    %v160 = vsel %vm159, 1, 0
    %v161 = vcvt.s32.f32 %v160
    %v162 = vadd.f32 %v161, %v84
    %v163 = vsub.f32 %v162, %v89
    %v164 = vsub.f32 %v163, %v74
    %v165 = vmul.f32 %v164, %v164
    %v166 = vsel %vm90, %v165, 0.0
    %v167 = vrot.slane %v166, 4
    %v168 = vadd.f32 %v166, %v167
    %v169 = vrot.slane %v168, 2
    %v170 = vadd.f32 %v168, %v169
    %v171 = vrot.slane %v170, 1
    %v172 = vadd.f32 %v170, %v171
    %vm173 = vcmask 57344
    %v174 = vsel %vm173, %v144, 0.0
    %175 = vadd.xlane.f32.xlu0 %v174
    %v176 = vpop.xlane.xlu0 %175
    %v177 = vrot.slane %v176, 4
    %v178 = vadd.f32 %v176, %v177
    %v179 = vrot.slane %v178, 2
    %v180 = vadd.f32 %v178, %v179
    %v181 = vrot.slane %v180, 1
    %v182 = vadd.f32 %v180, %v181
    %s183 = vtos %v182
    %v184 = vsel %vm173, %v172, 0.0
    %185 = vadd.xlane.f32.xlu0 %v184
    %v186 = vpop.xlane.xlu0 %185
    %v187 = vrot.slane %v186, 4
    %v188 = vadd.f32 %v186, %v187
    %v189 = vrot.slane %v188, 2
    %v190 = vadd.f32 %v188, %v189
    %v191 = vrot.slane %v190, 1
    %v192 = vadd.f32 %v190, %v191
    %s193 = vtos %v192
    %v194 = vld [vmem:[#allocation10] sm:$0x1]
    %s195 = smul.f32 %s183, 0.125
    %s196 = smul.f32 %s193, 0.015625
    %s197 = sadd.f32 %s195, %s196
    %v198 = vstv %s197
    %v199 = vadd.f32 %v194, %v198
    %vm200 = vcmask 0
    %201 = vst.msk [vmem:[#allocation10] sm:$0x1] %vm200, %v199
    // Predicated region
    $region38: #{tpu_custom_call.1} parent=1 // pred_check
      _
    $region39: #{tpu_custom_call.1} parent=1 // pred_check_branch
      %203 = sbr.rel (0) target = $region41
    $region40: #{tpu_custom_call.1} parent=1 // pred_region
      %s205 = ssub.s32 16, 16
      %206 = vsyncadd [#allocation4], %s205
      %s208 = sshll.u32 [#allocation10], 4
      %s209 = int_to_ptr.vmem [resolvable:$true] %s208
      %211 = dma.vmem_to_hbm [thread:$0]  %s209, 16, %s4, [#allocation4]
    $region41: #{tpu_custom_call.1} parent=1 // pred_fallthru
      _
    // Predicated region
    $region42: #{tpu_custom_call.1} parent=1 // pred_check
      _
    $region43: #{tpu_custom_call.1} parent=1 // pred_check_branch
      %213 = sbr.rel (0) target = $region45
    $region44: #{tpu_custom_call.1} parent=1 // pred_region
      %214 = dma.done [#allocation4], 16
    $region45: #{tpu_custom_call.1} parent=1 // pred_fallthru
      _
    %215 = vsyncpa [#allocation3], 1
    %216 = vsyncpa [#allocation6], 1
    %217 = vsyncpa [#allocation9], 1
    %218 = vsyncpa [#allocation4], 1

</llo_original>
